<compile_context>
chip_gen: v6e
topology: v6e:2x2x1
jax: 0.10.0
libtpu: 0.0.40
codegen_flags: <defaults>
</compile_context>

<pallas_src>
import functools

import jax
import jax.numpy as jnp
from jax.experimental import pallas as pl
from jax.experimental.pallas import tpu as pltpu

LANE = 128          # lane-dense output width (vreg lane count)
BM_CAP = 1024       # max rows per grid step (review: sweep 512-2048)


def _round_up(n, m):
    return ((n + m - 1) // m) * m


def _choose_bm(B):
    """Rows per grid step: multiple of 16 (bf16 sublane pack), capped, and split
    so the grid has >=2 steps whenever the batch allows (v7x 2-TC sharding)."""
    bm = min(BM_CAP, _round_up(B, 16))
    if B > 16 and _round_up(B, bm) // bm < 2:
        bm = max(16, _round_up((B + 1) // 2, 16))
    return bm


def ppo_fused_kernel(x_ref, w1_ref, b1_ref, w2_ref, b2_ref, out_ref, *, out_size):
    x = x_ref[...]                                                   # (bm, in) bf16

    # Fused layer 1: [h_actor | h_critic | 0-pad] in one bf16 MXU pass, f32 acc.
    h = jnp.dot(x, w1_ref[...], preferred_element_type=jnp.float32) + b1_ref[...]
    h = jnp.maximum(h, 0.0)                                          # (bm, hpad) f32

    # Fused layer 2 (block-diagonal, lane-padded): [logits | value | 0 ...].
    y = jnp.dot(h.astype(jnp.bfloat16), w2_ref[...],
                preferred_element_type=jnp.float32) + b2_ref[...]    # (bm, 128) f32

    # Mask-safe, numerically-stable softmax over the logit lanes only.
    col = jax.lax.broadcasted_iota(jnp.int32, y.shape, dimension=1)
    is_logit = col < out_size
    logits = jnp.where(is_logit, y, jnp.float32(-1e30))              # bounded, no inf
    m = jnp.max(logits, axis=-1, keepdims=True)
    e = jnp.exp(logits - m)                                          # non-logit lanes -> 0
    denom = jnp.sum(e, axis=-1, keepdims=True)
    probs = e * pl.reciprocal(denom, approx=False)                   # exact: probs sum to 1

    # Keep the critic value in lane `out_size`; everything else carries probs/zeros.
    value_lane = jnp.where(col == out_size, y, 0.0)

    # Single unmasked 128-lane store.
    out_ref[...] = probs + value_lane


def fuse_params(params):
    """One-time wrapper-side fusion of actor/critic weights (not per call)."""
    in_size, hid = params["w1a"].shape
    out_size = params["w2a"].shape[1]
    assert out_size + 1 <= LANE
    hpad = _round_up(2 * hid, LANE)   # lane-dense fused hidden dim

    # Layer 1: [w1a | w1c | 0-pad] -> (in, hpad)
    w1 = jnp.zeros((in_size, hpad), jnp.float32)
    w1 = w1.at[:, :hid].set(params["w1a"])
    w1 = w1.at[:, hid:2 * hid].set(params["w1c"])
    b1 = jnp.zeros((1, hpad), jnp.float32)
    b1 = b1.at[:, :hid].set(params["b1a"])
    b1 = b1.at[:, hid:2 * hid].set(params["b1c"])

    # Layer 2: block-diagonal, zero rows for the padded hidden, padded to 128 lanes.
    w2 = jnp.zeros((hpad, LANE), jnp.float32)
    w2 = w2.at[:hid, :out_size].set(params["w2a"])
    w2 = w2.at[hid:2 * hid, out_size:out_size + 1].set(params["w2c"])
    b2 = jnp.zeros((1, LANE), jnp.float32)
    b2 = b2.at[:, :out_size].set(params["b2a"])
    b2 = b2.at[:, out_size:out_size + 1].set(params["b2c"])

    # bf16 MXU operands; biases stay f32 (added to the f32 accumulator).
    return dict(w1=w1.astype(jnp.bfloat16), b1=b1,
                w2=w2.astype(jnp.bfloat16), b2=b2, out_size=out_size)


def ppo_forward(x, w1, b1, w2, b2, *, out_size):
    """x: (B, input_size) f32. Returns (probs (B,out), values (B,1)) in f32."""
    B, in_size = x.shape
    hpad = w1.shape[1]

    bm = _choose_bm(B)
    Bp = _round_up(B, bm)
    if Bp != B:
        x = jnp.pad(x, ((0, Bp - B), (0, 0)))
    x = x.astype(jnp.bfloat16)          # halve the dominant HBM read stream

    kernel = functools.partial(ppo_fused_kernel, out_size=out_size)

    cost = pl.CostEstimate(
        flops=2 * Bp * (in_size * hpad + hpad * LANE),
        transcendentals=Bp * LANE,
        bytes_accessed=(Bp * in_size * 2 + Bp * LANE * 4
                        + w1.size * 2 + w2.size * 2 + b1.size * 4 + b2.size * 4),
    )

    out = pl.pallas_call(
        kernel,
        out_shape=jax.ShapeDtypeStruct((Bp, LANE), jnp.float32),
        grid=(Bp // bm,),
        in_specs=[
            pl.BlockSpec((bm, in_size), lambda i: (i, 0)),
            pl.BlockSpec(w1.shape, lambda i: (0, 0)),   # weights resident in VMEM
            pl.BlockSpec(b1.shape, lambda i: (0, 0)),
            pl.BlockSpec(w2.shape, lambda i: (0, 0)),
            pl.BlockSpec(b2.shape, lambda i: (0, 0)),
        ],
        out_specs=pl.BlockSpec((bm, LANE), lambda i: (i, 0)),
        compiler_params=pltpu.CompilerParams(
            # Batch axis shards across the 2 TensorCores on v7x; no-op on v5e/v6e.
            # At bm <= 2048 VMEM use is ~1 MiB, far below every scoped default,
            # so no explicit vmem_limit_bytes is needed.
            dimension_semantics=("parallel",)),
        cost_estimate=cost,
    )(x, w1, b1, w2, b2)

    # Single narrow slice (width out_size+1) of the lane-dense slab; under jit
    # this fuses with the consumer instead of re-reading the full slab twice.
    packed = out[:B, :out_size + 1]
    probs = packed[:, :out_size]
    values = packed[:, out_size:out_size + 1]
    return probs, values


def init_params(key, input_size, hidden_size, output_size):
    """Deterministic init mimicking PyTorch Linear's U(-1/sqrt(fan_in), 1/sqrt(fan_in))."""
    ks = jax.random.split(key, 8)

    def lin(kw, kb, fan_in, fan_out):
        bound = 1.0 / jnp.sqrt(jnp.float32(fan_in))
        w = jax.random.uniform(kw, (fan_in, fan_out), jnp.float32, -bound, bound)
        b = jax.random.uniform(kb, (1, fan_out), jnp.float32, -bound, bound)
        return w, b

    w1a, b1a = lin(ks[0], ks[1], input_size, hidden_size)
    w2a, b2a = lin(ks[2], ks[3], hidden_size, output_size)
    w1c, b1c = lin(ks[4], ks[5], input_size, hidden_size)
    w2c, b2c = lin(ks[6], ks[7], hidden_size, 1)
    return dict(w1a=w1a, b1a=b1a, w2a=w2a, b2a=b2a,
                w1c=w1c, b1c=b1c, w2c=w2c, b2c=b2c)


def ppo_forward_ref(x, p):
    """Pure-JAX f32 reference for correctness check."""
    h_a = jnp.maximum(x @ p["w1a"] + p["b1a"], 0.0)
    probs = jax.nn.softmax(h_a @ p["w2a"] + p["b2a"], axis=-1)
    h_c = jnp.maximum(x @ p["w1c"] + p["b1c"], 0.0)
    values = h_c @ p["w2c"] + p["b2c"]
    return probs, values


if __name__ == "__main__":
    input_size, hidden_size, output_size = 16, 32, 4
    batch = 8

    key = jax.random.PRNGKey(0)
    k_x, k_p = jax.random.split(key)
    x = jax.random.normal(k_x, (batch, input_size), dtype=jnp.float32)
    params = init_params(k_p, input_size, hidden_size, output_size)
    fused = fuse_params(params)   # one-time fusion, reused across calls

    fwd = jax.jit(ppo_forward, static_argnames=("out_size",))
    probs, values = fwd(x, fused["w1"], fused["b1"], fused["w2"], fused["b2"],
                        out_size=fused["out_size"])
    probs = jax.block_until_ready(probs)
    values = jax.block_until_ready(values)

    # sanity check against pure-f32 JAX reference (kernel matmuls are bf16)
    probs_ref, values_ref = ppo_forward_ref(x, params)
    assert probs.shape == (batch, output_size)
    assert values.shape == (batch, 1)
    assert jnp.allclose(probs, probs_ref, atol=1e-2, rtol=1e-2)
    assert jnp.allclose(values, values_ref, atol=1e-2, rtol=1e-2)
    assert jnp.allclose(jnp.sum(probs, axis=-1), 1.0, atol=1e-3)

    print("KERNEL_OK")
</pallas_src>

<mosaic_0001>
module attributes {stable_mosaic.version = 11 : i64} {
  func.func @ppo_fused_kernel(%arg0: i32, %arg1: memref<16x16xbf16, #tpu.memory_space<vmem>>, %arg2: memref<16x128xbf16, #tpu.memory_space<vmem>>, %arg3: memref<1x128xf32, #tpu.memory_space<vmem>>, %arg4: memref<128x128xbf16, #tpu.memory_space<vmem>>, %arg5: memref<1x128xf32, #tpu.memory_space<vmem>>, %arg6: memref<16x128xf32, #tpu.memory_space<vmem>>) attributes {dimension_semantics = [#tpu.dimension_semantics<parallel>], iteration_bounds = array<i64: 1>, scalar_prefetch = 0 : i64, scratch_operands = 0 : i64, tpu.core_type = #tpu.core_type<tc>, window_params = [{transform_indices = @transform_0, window_bounds = array<i64: 16, 16>}, {pipeline_mode = #tpu.pipeline_mode<synchronous>, transform_indices = @transform_1, window_bounds = array<i64: 16, 128>}, {pipeline_mode = #tpu.pipeline_mode<synchronous>, transform_indices = @transform_2, window_bounds = array<i64: 1, 128>}, {pipeline_mode = #tpu.pipeline_mode<synchronous>, transform_indices = @transform_3, window_bounds = array<i64: 128, 128>}, {pipeline_mode = #tpu.pipeline_mode<synchronous>, transform_indices = @transform_4, window_bounds = array<i64: 1, 128>}, {transform_indices = @transform_5, window_bounds = array<i64: 16, 128>}]} {
    %c0 = arith.constant 0 : index
    %c0_0 = arith.constant 0 : index
    %0 = vector.load %arg1[%c0, %c0_0] : memref<16x16xbf16, #tpu.memory_space<vmem>>, vector<16x16xbf16>
    %c0_1 = arith.constant 0 : index
    %c0_2 = arith.constant 0 : index
    %1 = vector.load %arg2[%c0_1, %c0_2] : memref<16x128xbf16, #tpu.memory_space<vmem>>, vector<16x128xbf16>
    %cst = arith.constant dense<0.000000e+00> : vector<16x128xf32>
    %2 = tpu.matmul %0, %1, %cst {dimension_numbers = #tpu.dot_dimension_numbers<[1], [0], [0], [1], [0, 0, 1, 1], [], []>} : vector<16x16xbf16>, vector<16x128xbf16>, vector<16x128xf32> -> vector<16x128xf32>
    %c0_3 = arith.constant 0 : index
    %c0_4 = arith.constant 0 : index
    %3 = vector.load %arg3[%c0_3, %c0_4] : memref<1x128xf32, #tpu.memory_space<vmem>>, vector<1x128xf32>
    %4 = vector.broadcast %3 : vector<1x128xf32> to vector<16x128xf32>
    %5 = arith.addf %2, %4 : vector<16x128xf32>
    %cst_5 = arith.constant 0.000000e+00 : f32
    %6 = vector.broadcast %cst_5 : f32 to vector<16x128xf32>
    %7 = arith.maximumf %5, %6 : vector<16x128xf32>
    %8 = arith.truncf %7 : vector<16x128xf32> to vector<16x128xbf16>
    %c0_6 = arith.constant 0 : index
    %c0_7 = arith.constant 0 : index
    %9 = vector.load %arg4[%c0_6, %c0_7] : memref<128x128xbf16, #tpu.memory_space<vmem>>, vector<128x128xbf16>
    %cst_8 = arith.constant dense<0.000000e+00> : vector<16x128xf32>
    %10 = tpu.matmul %8, %9, %cst_8 {dimension_numbers = #tpu.dot_dimension_numbers<[1], [0], [0], [1], [0, 0, 1, 1], [], []>} : vector<16x128xbf16>, vector<128x128xbf16>, vector<16x128xf32> -> vector<16x128xf32>
    %c0_9 = arith.constant 0 : index
    %c0_10 = arith.constant 0 : index
    %11 = vector.load %arg5[%c0_9, %c0_10] : memref<1x128xf32, #tpu.memory_space<vmem>>, vector<1x128xf32>
    %12 = vector.broadcast %11 : vector<1x128xf32> to vector<16x128xf32>
    %13 = arith.addf %10, %12 : vector<16x128xf32>
    %14 = tpu.iota {dimensions = array<i32: 1>} : vector<16x128xi32>
    %c4_i32 = arith.constant 4 : i32
    %15 = vector.broadcast %c4_i32 : i32 to vector<16x128xi32>
    %16 = arith.cmpi slt, %14, %15 : vector<16x128xi32>
    %cst_11 = arith.constant -1.000000e+30 : f32
    %17 = vector.broadcast %cst_11 : f32 to vector<16x128xf32>
    %18 = arith.select %16, %13, %17 : vector<16x128xi1>, vector<16x128xf32>
    %cst_12 = arith.constant dense<0xFF800000> : vector<16xf32>
    %19 = vector.multi_reduction <maximumf>, %18, %cst_12 [1] : vector<16x128xf32> to vector<16xf32>
    %20 = vector.shape_cast %19 : vector<16xf32> to vector<16x1xf32>
    %21 = vector.broadcast %20 : vector<16x1xf32> to vector<16x128xf32>
    %22 = arith.subf %18, %21 : vector<16x128xf32>
    %23 = math.exp %22 : vector<16x128xf32>
    %cst_13 = arith.constant dense<0.000000e+00> : vector<16xf32>
    %24 = vector.multi_reduction <add>, %23, %cst_13 [1] : vector<16x128xf32> to vector<16xf32>
    %25 = vector.shape_cast %24 : vector<16xf32> to vector<16x1xf32>
    %26 = tpu.reciprocal %25 : vector<16x1xf32> -> vector<16x1xf32>
    %27 = vector.broadcast %26 : vector<16x1xf32> to vector<16x128xf32>
    %28 = arith.mulf %23, %27 : vector<16x128xf32>
    %c4_i32_14 = arith.constant 4 : i32
    %29 = vector.broadcast %c4_i32_14 : i32 to vector<16x128xi32>
    %30 = arith.cmpi eq, %14, %29 : vector<16x128xi32>
    %cst_15 = arith.constant 0.000000e+00 : f32
    %31 = vector.broadcast %cst_15 : f32 to vector<16x128xf32>
    %32 = arith.select %30, %13, %31 : vector<16x128xi1>, vector<16x128xf32>
    %33 = arith.addf %28, %32 : vector<16x128xf32>
    %c0_16 = arith.constant 0 : index
    %c0_17 = arith.constant 0 : index
    %34 = vector.load %arg6[%c0_16, %c0_17] : memref<16x128xf32, #tpu.memory_space<vmem>>, vector<16x128xf32>
    tpu.vector_store %arg6[%c0_16, %c0_17], %33 {strides = array<i32>} : memref<16x128xf32, #tpu.memory_space<vmem>>, vector<16x128xf32>,
    return
  }
  func.func @transform_0(%arg0: i32) -> (i32, i32) {
    %c0_i32 = arith.constant 0 : i32
    %c0_i32_0 = arith.constant 0 : i32
    return %arg0, %c0_i32 : i32, i32
  }
  func.func @transform_1(%arg0: i32) -> (i32, i32) {
    %c0_i32 = arith.constant 0 : i32
    %c0_i32_0 = arith.constant 0 : i32
    %c0_i32_1 = arith.constant 0 : i32
    return %c0_i32, %c0_i32_0 : i32, i32
  }
  func.func @transform_2(%arg0: i32) -> (i32, i32) {
    %c0_i32 = arith.constant 0 : i32
    %c0_i32_0 = arith.constant 0 : i32
    %c0_i32_1 = arith.constant 0 : i32
    return %c0_i32, %c0_i32_0 : i32, i32
  }
  func.func @transform_3(%arg0: i32) -> (i32, i32) {
    %c0_i32 = arith.constant 0 : i32
    %c0_i32_0 = arith.constant 0 : i32
    %c0_i32_1 = arith.constant 0 : i32
    return %c0_i32, %c0_i32_0 : i32, i32
  }
  func.func @transform_4(%arg0: i32) -> (i32, i32) {
    %c0_i32 = arith.constant 0 : i32
    %c0_i32_0 = arith.constant 0 : i32
    %c0_i32_1 = arith.constant 0 : i32
    return %c0_i32, %c0_i32_0 : i32, i32
  }
  func.func @transform_5(%arg0: i32) -> (i32, i32) {
    %c0_i32 = arith.constant 0 : i32
    %c0_i32_0 = arith.constant 0 : i32
    return %arg0, %c0_i32 : i32, i32
  }
}

</mosaic_0001>

<llo_original>
// kernel: ppo_forward.1
$region0: #{ppo_forward.1}
  #allocation0 [shape = 'u32[]', space=smem, size = 0x4, offset = 0x4, fixed_abs, tag = 'smem constant byte address 0x4 - core index']
  #allocation1 [shape = 'u32[144,128]{1,0:T(1,128)}', space=vmem, size = 0x12000, scoped, tag = 'internal scratch']
  %s0 = inlined_call_operand.vmem [shape: bf16[16,16], index: 0, kind: input, shape index: {}]
  %s1 = inlined_call_operand.vmem [shape: bf16[16,128], index: 1, kind: input, shape index: {}]
  %s2 = inlined_call_operand.vmem [shape: f32[1,128], index: 2, kind: input, shape index: {}]
  %s3 = inlined_call_operand.hbm [shape: bf16[128,128], index: 3, kind: input, shape index: {}]
  %s4 = inlined_call_operand.vmem [shape: f32[1,128], index: 4, kind: input, shape index: {}]
  %s5 = inlined_call_operand.vmem [shape: f32[16,128], index: 5, kind: output, shape index: {}]
  %s6 = sld [smem:[#allocation0]]
  $region34: #{ppo_forward.1} parent=0
    _
  %s8 = ssub.s32 1, %s6
  %s9 = scalar_select 0, %s8, %s6
  $region1: #{ppo_forward.1} parent=0
    #allocation2 [shape = 'u8[32768]{0}', space=vmem, size = 0x8000, scoped, tag = 'input window, operand 3, single buffered']
    #allocation3 [shape = 's32[1]{0}', space=sflag, size = 0x4, scoped, tag = 'scoped memory for ppo_forward.1']
    %10 = vsyncpa [#allocation3], 0
    // Predicated region
    $region2: #{ppo_forward.1} parent=1 // pred_check
      _
    $region3: #{ppo_forward.1} parent=1 // pred_check_branch
      %12 = sbr.rel (0) target = $region5
    $region4: #{ppo_forward.1} parent=1 // pred_region
      _
    $region5: #{ppo_forward.1} parent=1 // pred_fallthru
      _
    // Predicated region
    $region6: #{ppo_forward.1} parent=1 // pred_check
      _
    $region7: #{ppo_forward.1} parent=1 // pred_check_branch
      %14 = sbr.rel (0) target = $region9
    $region8: #{ppo_forward.1} parent=1 // pred_region
      _
    $region9: #{ppo_forward.1} parent=1 // pred_fallthru
      _
    // Predicated region
    $region10: #{ppo_forward.1} parent=1 // pred_check
      _
    $region11: #{ppo_forward.1} parent=1 // pred_check_branch
      %16 = sbr.rel (0) target = $region13
    $region12: #{ppo_forward.1} parent=1 // pred_region
      _
    $region13: #{ppo_forward.1} parent=1 // pred_fallthru
      _
    // Predicated region
    $region14: #{ppo_forward.1} parent=1 // pred_check
      _
    $region15: #{ppo_forward.1} parent=1 // pred_check_branch
      %18 = sbr.rel (0) target = $region17
    $region16: #{ppo_forward.1} parent=1 // pred_region
      %s20 = ssub.s32 1024, 1024
      %21 = vsyncadd [#allocation3], %s20
      %s22 = sshll.u32 [#allocation2], 4
      %s23 = int_to_ptr.vmem [resolvable:$true] %s22
      %28 = dma.hbm_to_vmem [thread:$0]  %s3, 1024, %s23, [#allocation3], 64, 64, 4
    $region17: #{ppo_forward.1} parent=1 // pred_fallthru
      _
    // Predicated region
    $region18: #{ppo_forward.1} parent=1 // pred_check
      _
    $region19: #{ppo_forward.1} parent=1 // pred_check_branch
      %30 = sbr.rel (0) target = $region21
    $region20: #{ppo_forward.1} parent=1 // pred_region
      _
    $region21: #{ppo_forward.1} parent=1 // pred_fallthru
      _
    // Predicated region
    $region22: #{ppo_forward.1} parent=1 // pred_check
      _
    $region23: #{ppo_forward.1} parent=1 // pred_check_branch
      %32 = sbr.rel (0) target = $region25
    $region24: #{ppo_forward.1} parent=1 // pred_region
      %33 = dma.done [#allocation3], 1024
    $region25: #{ppo_forward.1} parent=1 // pred_fallthru
      _
    %v35 = vld [vmem:[%s0] sm:$0xf]
    %v36 = vld [vmem:[%s0 + $0x4] sm:$0xf]
    %v37 = vld [vmem:[%s1] sm:$0xf]
    %v38 = vld [vmem:[%s1 + $0x4] sm:$0xf]
    %v39 = vld [vmem:[%s2] sm:$0x1]
    %v41 = vlaneseq
    %v42 = vshrl.u32 %v41, 7
    %v43 = vsub.s32 0, %v42
    %v44 = vrot.slane %v39, %v43
    %v48 = vunpack.c.l.b16 %v35
    %v49 = vunpack.c.l.b16 %v36
    %v50 = vpack.c.b16 %v49, %v48
    %v53 = vunpack.c.l.b16 %v37
    %v54 = vunpack.c.l.b16 %v38
    %v55 = vpack.c.b16 %v54, %v53
    %vm57 = vcmask 130048
    %v59 = vsel %vm57, %v50, 0
    %61 = vmatprep.subr.bf16.mxu0 0
    %62 = vmatpush1.bf16.msra.mxu0 0
    %63 = vmatprep.subr.bf16.mxu0 0
    %64 = vmatpush1.bf16.msra.mxu0 0
    %65 = vmatprep.subr.bf16.mxu0 0
    %66 = vmatpush1.bf16.msra.mxu0 0
    %67 = vmatprep.subr.bf16.mxu0 0
    %68 = vmatpush1.bf16.msra.mxu0 0
    %69 = vmatprep.subr.bf16.mxu0 0
    %70 = vmatpush1.bf16.msra.mxu0 0
    %71 = vmatprep.subr.bf16.mxu0 0
    %72 = vmatpush1.bf16.msra.mxu0 0
    %73 = vmatprep.subr.bf16.mxu0 0
    %74 = vmatpush1.bf16.msra.mxu0 0
    %75 = vmatprep.subr.bf16.mxu0 0
    %76 = vmatpush1.bf16.msra.mxu0 %v55
    %77 = vmatprep.subr.bf16.mxu0 0
    %78 = vmatpush2.bf16.msra.mxu0 0
    %79 = vmatprep.subr.bf16.mxu0 0
    %80 = vmatpush2.bf16.msra.mxu0 0
    %81 = vmatprep.subr.bf16.mxu0 0
    %82 = vmatpush2.bf16.msra.mxu0 0
    %83 = vmatprep.subr.bf16.mxu0 0
    %84 = vmatpush2.bf16.msra.mxu0 0
    %85 = vmatprep.subr.bf16.mxu0 0
    %86 = vmatpush2.bf16.msra.mxu0 0
    %87 = vmatprep.subr.bf16.mxu0 0
    %88 = vmatpush2.bf16.msra.mxu0 0
    %89 = vmatprep.subr.bf16.mxu0 0
    %90 = vmatpush2.bf16.msra.mxu0 0
    %91 = vmatprep.subr.bf16.mxu0 0
    %92 = vmatpush2.bf16.msra.mxu0 0
    %93 = vmatprep.mubr.bf16.mxu0 0
    %94 = vmatmul.mubr.bf16.gmra.mxu0 %v59
    %v95 = vpop.f32.mrf.mxu0
    %v96 = vadd.f32 %v44, %v95
    %v97 = vpop.f32.mrf.mxu0
    %v98 = vpop.f32.mrf.mxu0
    %v99 = vadd.f32 %v44, %v98
    %v100 = vpop.f32.mrf.mxu0
    %101 = vdwg.mxu0
    %v102 = vmax.f32 %v96, 0.0
    %v103 = vmax.f32 %v99, 0.0
    %v104 = vpack.c.bf16 %v103, %v102
    %v105 = vld [vmem:[#allocation2] sm:$0xf]
    %v106 = vld [vmem:[#allocation2 + $0x4] sm:$0xf]
    %v107 = vld [vmem:[#allocation2 + $0x8] sm:$0xf]
    %v108 = vld [vmem:[#allocation2 + $0xc] sm:$0xf]
    %v109 = vld [vmem:[#allocation2 + $0x10] sm:$0xf]
    %v110 = vld [vmem:[#allocation2 + $0x14] sm:$0xf]
    %v111 = vld [vmem:[#allocation2 + $0x18] sm:$0xf]
    %v112 = vld [vmem:[#allocation2 + $0x1c] sm:$0xf]
    %v113 = vld [vmem:[#allocation2 + $0x20] sm:$0xf]
    %v114 = vld [vmem:[#allocation2 + $0x24] sm:$0xf]
    %v115 = vld [vmem:[#allocation2 + $0x28] sm:$0xf]
    %v116 = vld [vmem:[#allocation2 + $0x2c] sm:$0xf]
    %v117 = vld [vmem:[#allocation2 + $0x30] sm:$0xf]
    %v118 = vld [vmem:[#allocation2 + $0x34] sm:$0xf]
    %v119 = vld [vmem:[#allocation2 + $0x38] sm:$0xf]
    %v120 = vld [vmem:[#allocation2 + $0x3c] sm:$0xf]
    %v121 = vld [vmem:[%s4] sm:$0x1]
    %v123 = vlaneseq
    %v124 = vshrl.u32 %v123, 7
    %v125 = vsub.s32 0, %v124
    %v126 = vrot.slane %v121, %v125
    %v144 = vunpack.c.l.b16 %v105
    %v145 = vunpack.c.l.b16 %v106
    %v146 = vunpack.c.l.b16 %v107
    %v147 = vunpack.c.l.b16 %v108
    %v148 = vunpack.c.l.b16 %v109
    %v149 = vunpack.c.l.b16 %v110
    %v150 = vunpack.c.l.b16 %v111
    %v151 = vunpack.c.l.b16 %v112
    %v152 = vunpack.c.l.b16 %v113
    %v153 = vunpack.c.l.b16 %v114
    %v154 = vunpack.c.l.b16 %v115
    %v155 = vunpack.c.l.b16 %v116
    %v156 = vunpack.c.l.b16 %v117
    %v157 = vunpack.c.l.b16 %v118
    %v158 = vunpack.c.l.b16 %v119
    %v159 = vunpack.c.l.b16 %v120
    %v160 = vpack.c.b16 %v145, %v144
    %v161 = vpack.c.b16 %v147, %v146
    %v162 = vpack.c.b16 %v149, %v148
    %v163 = vpack.c.b16 %v151, %v150
    %v164 = vpack.c.b16 %v153, %v152
    %v165 = vpack.c.b16 %v155, %v154
    %v166 = vpack.c.b16 %v157, %v156
    %v167 = vpack.c.b16 %v159, %v158
    %176 = vmatprep.subr.bf16.mxu0 0
    %177 = vmatpush1.bf16.msra.mxu0 %v167
    %178 = vmatprep.subr.bf16.mxu0 0
    %179 = vmatpush1.bf16.msra.mxu0 %v166
    %180 = vmatprep.subr.bf16.mxu0 0
    %181 = vmatpush1.bf16.msra.mxu0 %v165
    %182 = vmatprep.subr.bf16.mxu0 0
    %183 = vmatpush1.bf16.msra.mxu0 %v164
    %184 = vmatprep.subr.bf16.mxu0 0
    %185 = vmatpush1.bf16.msra.mxu0 %v163
    %186 = vmatprep.subr.bf16.mxu0 0
    %187 = vmatpush1.bf16.msra.mxu0 %v162
    %188 = vmatprep.subr.bf16.mxu0 0
    %189 = vmatpush1.bf16.msra.mxu0 %v161
    %190 = vmatprep.subr.bf16.mxu0 0
    %191 = vmatpush1.bf16.msra.mxu0 %v160
    %192 = vmatprep.subr.bf16.mxu0 0
    %193 = vmatpush2.bf16.msra.mxu0 0
    %194 = vmatprep.subr.bf16.mxu0 0
    %195 = vmatpush2.bf16.msra.mxu0 0
    %196 = vmatprep.subr.bf16.mxu0 0
    %197 = vmatpush2.bf16.msra.mxu0 0
    %198 = vmatprep.subr.bf16.mxu0 0
    %199 = vmatpush2.bf16.msra.mxu0 0
    %200 = vmatprep.subr.bf16.mxu0 0
    %201 = vmatpush2.bf16.msra.mxu0 0
    %202 = vmatprep.subr.bf16.mxu0 0
    %203 = vmatpush2.bf16.msra.mxu0 0
    %204 = vmatprep.subr.bf16.mxu0 0
    %205 = vmatpush2.bf16.msra.mxu0 0
    %206 = vmatprep.subr.bf16.mxu0 0
    %207 = vmatpush2.bf16.msra.mxu0 0
    %208 = vmatprep.mubr.bf16.mxu0 0
    %209 = vmatmul.mubr.bf16.gmra.mxu0 %v104
    %v210 = vpop.f32.mrf.mxu0
    %v211 = vadd.f32 %v126, %v210
    %v212 = vpop.f32.mrf.mxu0
    %v213 = vpop.f32.mrf.mxu0
    %v214 = vadd.f32 %v126, %v213
    %v215 = vpop.f32.mrf.mxu0
    %216 = vdwg.mxu0
    %v217 = vlaneseq
    %v218 = vand.u32 %v217, 127
    %vm219 = vcmp.lt.s32.totalorder %v218, 4
    %v220 = vsel %vm219, %v211, -1e+30
    %v221 = vsel %vm219, %v214, -1e+30
    %222 = vmax.xlane.f32.xlu0 %v220
    %v223 = vpop.xlane.xlu0 %222
    %224 = vmax.xlane.f32.xlu0 %v221
    %v225 = vpop.xlane.xlu0 %224
    %v226 = vsub.f32 %v220, %v223
    %v227 = vsub.f32 %v221, %v225
    %v228 = vmul.f32 %v226, 1.442695
    %v229 = vpow.pop %v228
    %v230 = vmul.f32 %v227, 1.442695
    %v231 = vpow.pop %v230
    %232 = vadd.xlane.f32.xlu0 %v229
    %v233 = vpop.xlane.xlu0 %232
    %234 = vadd.xlane.f32.xlu0 %v231
    %v235 = vpop.xlane.xlu0 %234
    %v236 = vrcp.pop %v233
    %v237 = vrcp.pop %v235
    %v238 = vmul.f32 %v229, %v236
    %v239 = vmul.f32 %v231, %v237
    %vm240 = vcmp.eq.s32.totalorder %v218, 4
    %v241 = vsel %vm240, %v211, 0.0
    %v242 = vsel %vm240, %v214, 0.0
    %v243 = vadd.f32 %v238, %v241
    %v244 = vadd.f32 %v239, %v242
    %245 = vst [vmem:[%s5] sm:$0xff] %v243
    %246 = vst [vmem:[%s5 + $0x8] sm:$0xff] %v244
    // Predicated region
    $region26: #{ppo_forward.1} parent=1 // pred_check
      _
    $region27: #{ppo_forward.1} parent=1 // pred_check_branch
      %248 = sbr.rel (0) target = $region29
    $region28: #{ppo_forward.1} parent=1 // pred_region
      _
    $region29: #{ppo_forward.1} parent=1 // pred_fallthru
      _
    // Predicated region
    $region30: #{ppo_forward.1} parent=1 // pred_check
      _
    $region31: #{ppo_forward.1} parent=1 // pred_check_branch
      %250 = sbr.rel (0) target = $region33
    $region32: #{ppo_forward.1} parent=1 // pred_region
      _
    $region33: #{ppo_forward.1} parent=1 // pred_fallthru
      _
    %251 = vsyncpa [#allocation3], 1

</llo_original>
